<compile_context>
chip_gen: v5e
topology: v5e:2x2
jax: 0.10.0
libtpu: 0.0.40
codegen_flags: <defaults>
</compile_context>

<pallas_src>
import numpy as np
import jax
import jax.numpy as jnp
from jax.experimental import pallas as pl
from jax.experimental.pallas import tpu as pltpu

EPS = 1e-5  # nn.InstanceNorm3d default eps


# ----------------------------------------------------------------------------
# helpers
# ----------------------------------------------------------------------------
def _vmem_limit(est_bytes, lo=8 << 20, hi=32 << 20):
    """Explicit scoped-VMEM budget: 2x estimate + 1MiB headroom, clamped."""
    return int(min(max(2 * est_bytes + (1 << 20), lo), hi))


def _pick_spatial_tile(n, target=4096):
    """Largest 128-multiple divisor of n that is <= target (else n)."""
    if n <= target:
        return n
    for cand in range(target, 127, -128):
        if n % cand == 0:
            return cand
    return n


def upsample_matrix(size, scale):
    """(scale*size, size) linear-interp matrix, PyTorch align_corners=False."""
    out = size * scale
    m = np.zeros((out, size), np.float32)
    for i in range(out):
        src = max((i + 0.5) / scale - 0.5, 0.0)
        i0 = int(np.floor(src))
        i1 = min(i0 + 1, size - 1)
        lam = src - i0
        m[i, i0] += 1.0 - lam
        m[i, i1] += lam
    return m


# ----------------------------------------------------------------------------
# Kernel 1: spatially tiled conv1x1 + ReLU + per-(b,c) [sum, sum_sq] stats
# ----------------------------------------------------------------------------
def conv_relu_stats(x3, w, b2, *, spatial_tile=None):
    B, Cin, N = x3.shape
    Cout = w.shape[0]
    tn = spatial_tile or _pick_spatial_tile(N)
    assert N % tn == 0, (N, tn)
    nt = N // tn

    def kernel(x_ref, w_ref, b_ref, st_ref, acc_ref):
        t = pl.program_id(1)

        @pl.when(t == 0)
        def _():
            acc_ref[...] = jnp.zeros_like(acc_ref)

        x = x_ref[0]                                   # (Cin, tn)
        wmat = w_ref[...]                              # (Cout, Cin)
        # 1x1x1 conv as Cin broadcast-FMAs on the VPU (K is too small for MXU)
        acc = wmat[:, 0:1] * x[0:1, :]
        for c in range(1, Cin):                        # static unroll, Cin tiny
            acc = acc + wmat[:, c:c + 1] * x[c:c + 1, :]
        y = jnp.maximum(acc + b_ref[...], 0.0)         # (Cout, tn)

        acc_ref[:, 0:1] += jnp.sum(y, axis=1, keepdims=True)
        acc_ref[:, 1:2] += jnp.sum(y * y, axis=1, keepdims=True)

        @pl.when(t == nt - 1)
        def _():
            st_ref[0] = acc_ref[...]

    est = 4 * (2 * Cin * tn + 3 * Cout * tn
               + Cout * Cin + Cout + 6 * Cout + 4096)
    return pl.pallas_call(
        kernel,
        out_shape=jax.ShapeDtypeStruct((B, Cout, 2), jnp.float32),
        grid=(B, nt),
        in_specs=[pl.BlockSpec((1, Cin, tn), lambda b, t: (b, 0, t)),
                  pl.BlockSpec((Cout, Cin), lambda b, t: (0, 0)),
                  pl.BlockSpec((Cout, 1), lambda b, t: (0, 0))],
        out_specs=pl.BlockSpec((1, Cout, 2), lambda b, t: (b, 0, 0)),
        scratch_shapes=[pltpu.VMEM((Cout, 2), jnp.float32)],
        compiler_params=pltpu.CompilerParams(
            dimension_semantics=("parallel", "arbitrary"),
            vmem_limit_bytes=_vmem_limit(est)),
    )(x3, w, b2)


# ----------------------------------------------------------------------------
# Kernel 2: recompute conv + ReLU, apply folded scale/shift, trilinear x2
#           upsample as two 2-D MXU matmuls (block-diag D kron, plane HW kron)
# ----------------------------------------------------------------------------
def mod_upsample(x3, w, b2, ss, dims, scale=2, *, channel_tile=None):
    B, Cin, N = x3.shape
    Cout = w.shape[0]
    D, H, W = dims
    assert N == D * H * W
    s = scale
    ct = channel_tile or Cout
    assert Cout % ct == 0 and (ct == Cout or ct % 8 == 0)
    HW = H * W
    d_s = s * D
    hw_s = (s * H) * (s * W)

    md = upsample_matrix(D, s)                                      # (sD, D)
    mh = upsample_matrix(H, s)                                      # (sH, H)
    mw = upsample_matrix(W, s)                                      # (sW, W)
    # D axis: one block-diagonal left matmul over the whole channel tile.
    mdk = jnp.asarray(np.kron(np.eye(ct, dtype=np.float32), md))    # (ct*sD, ct*D)
    # H,W axes fused into one plane-kron right matmul (lane-dense output).
    mhw = jnp.asarray(np.kron(mh, mw).T)                            # (HW, sH*sW)

    def kernel(x_ref, w_ref, b_ref, ss_ref, mdk_ref, mhw_ref, o_ref):
        x = x_ref[0]                                   # (Cin, N), lane-dense
        wmat = w_ref[...]                              # (ct, Cin)
        # conv1x1 + bias + ReLU on the VPU (tiny K)
        acc = wmat[:, 0:1] * x[0:1, :]
        for c in range(1, Cin):                        # static unroll
            acc = acc + wmat[:, c:c + 1] * x[c:c + 1, :]
        y = jnp.maximum(acc + b_ref[...], 0.0)         # (ct, N)
        # instance-norm + SE modulation folded into per-(b,c) scale/shift
        ssv = ss_ref[0]                                # (ct, 2)
        z = y * ssv[:, 0:1] + ssv[:, 1:2]              # (ct, N)

        # --- trilinear x2 upsample: two clean MXU matmuls ---
        z2 = z.reshape(ct * D, HW)                     # (ct*D, HW)
        zd = jnp.dot(mdk_ref[...], z2,
                     preferred_element_type=jnp.float32)   # (ct*sD, HW)
        out = jnp.dot(zd, mhw_ref[...],
                      preferred_element_type=jnp.float32)  # (ct*sD, sH*sW)
        o_ref[0] = out.reshape(ct, d_s, hw_s)

    est = 4 * (2 * Cin * N                 # x (double-buffered)
               + ct * Cin + 3 * ct         # w, b, ss
               + ct * ct * d_s * D         # mdk
               + HW * hw_s                 # mhw
               + 3 * ct * N                # acc / y / z
               + ct * d_s * HW             # zd
               + 3 * ct * d_s * hw_s       # out value + double-buffered o tile
               + 4096)
    return pl.pallas_call(
        kernel,
        out_shape=jax.ShapeDtypeStruct((B, Cout, d_s, hw_s), jnp.float32),
        grid=(B, Cout // ct),
        in_specs=[pl.BlockSpec((1, Cin, N), lambda b, j: (b, 0, 0)),
                  pl.BlockSpec((ct, Cin), lambda b, j: (j, 0)),
                  pl.BlockSpec((ct, 1), lambda b, j: (j, 0)),
                  pl.BlockSpec((1, ct, 2), lambda b, j: (b, j, 0)),
                  pl.BlockSpec((ct * d_s, ct * D), lambda b, j: (0, 0)),
                  pl.BlockSpec((HW, hw_s), lambda b, j: (0, 0))],
        out_specs=pl.BlockSpec((1, ct, d_s, hw_s), lambda b, j: (b, j, 0, 0)),
        compiler_params=pltpu.CompilerParams(
            dimension_semantics=("parallel", "parallel"),
            vmem_limit_bytes=_vmem_limit(est)),
    )(x3, w, b2, ss, mdk, mhw)


# ----------------------------------------------------------------------------
# Glue
# ----------------------------------------------------------------------------
def se_branch(m, w1, b1, w2, b2):
    # 1x1x1 convs on (B, C, 1, 1, 1) pooled features == tiny dense layers.
    h = jnp.maximum(m @ w1.T + b1, 0.0)
    return h @ w2.T + b2


def upconv_forward(x, params, scale=2, *, spatial_tile=None, channel_tile=None):
    (wc, bc, w1g, b1g, w2g, b2g, w1b, b1b, w2b, b2b) = params
    B, Cin, D, H, W = x.shape
    Cout = wc.shape[0]
    N = D * H * W
    bc2 = bc.reshape(Cout, 1)
    x3 = x.reshape(B, Cin, N)

    # --- pass 1: per-(b,c) stats of y = relu(conv(x)) (Pallas) ---
    stats = conv_relu_stats(x3, wc, bc2, spatial_tile=spatial_tile)
    mean = stats[..., 0] / N                                  # (B, Cout)
    var = jnp.maximum(stats[..., 1] / N - mean * mean, 0.0)   # biased variance
    inv_std = jax.lax.rsqrt(var + EPS)

    # --- SE gamma/beta on pooled features (tiny, plain JAX glue) ---
    gamma = jax.nn.sigmoid(se_branch(mean, w1g, b1g, w2g, b2g))
    beta = jnp.tanh(se_branch(mean, w1b, b1b, w2b, b2b))

    # fold instance-norm + SE modulation into per-(b,c) scale/shift
    sc = gamma * inv_std
    sh = beta - sc * mean
    ss = jnp.stack([sc, sh], axis=-1)                         # (B, Cout, 2)

    # --- pass 2: recompute conv + modulate + upsample (Pallas) ---
    o = mod_upsample(x3, wc, bc2, ss, (D, H, W), scale,
                     channel_tile=channel_tile)               # (B,Cout,sD,sH*sW)
    return o.reshape(B, Cout, scale * D, scale * H, scale * W)


# ----------------------------------------------------------------------------
# Pure-JAX reference (same math, no Pallas) for correctness check
# ----------------------------------------------------------------------------
def upconv_reference(x, params, scale=2):
    (wc, bc, w1g, b1g, w2g, b2g, w1b, b1b, w2b, b2b) = params
    y = jnp.einsum('oc,bcdhw->bodhw', wc, x) + bc[None, :, None, None, None]
    y = jnp.maximum(y, 0.0)
    m = y.mean(axis=(2, 3, 4))
    gamma = jax.nn.sigmoid(se_branch(m, w1g, b1g, w2g, b2g))
    beta = jnp.tanh(se_branch(m, w1b, b1b, w2b, b2b))
    var = y.var(axis=(2, 3, 4))
    yh = (y - m[:, :, None, None, None]) / jnp.sqrt(
        var + EPS)[:, :, None, None, None]
    z = gamma[:, :, None, None, None] * yh + beta[:, :, None, None, None]
    D, H, W = x.shape[2:]
    md = jnp.asarray(upsample_matrix(D, scale))
    mh = jnp.asarray(upsample_matrix(H, scale))
    mw = jnp.asarray(upsample_matrix(W, scale))
    z = jnp.einsum('pd,bcdhw->bcphw', md, z)
    z = jnp.einsum('qh,bcphw->bcpqw', mh, z)
    z = jnp.einsum('rw,bcpqw->bcpqr', mw, z)
    return z


if __name__ == "__main__":
    B, Cin, Cout, D, H, W = 2, 4, 8, 8, 8, 8
    reduction = 2
    Cmid = Cout // reduction

    key = jax.random.PRNGKey(0)
    ks = jax.random.split(key, 11)
    # Conv3d(in, out, k=1) weights stored as (out, in); 1x1x1 dims dropped.
    wc = 0.2 * jax.random.normal(ks[0], (Cout, Cin), jnp.float32)
    bc = 0.1 * jax.random.normal(ks[1], (Cout,), jnp.float32)
    w1g = 0.2 * jax.random.normal(ks[2], (Cmid, Cout), jnp.float32)
    b1g = 0.1 * jax.random.normal(ks[3], (Cmid,), jnp.float32)
    w2g = 0.2 * jax.random.normal(ks[4], (Cout, Cmid), jnp.float32)
    b2g = 0.1 * jax.random.normal(ks[5], (Cout,), jnp.float32)
    w1b = 0.2 * jax.random.normal(ks[6], (Cmid, Cout), jnp.float32)
    b1b = 0.1 * jax.random.normal(ks[7], (Cmid,), jnp.float32)
    w2b = 0.2 * jax.random.normal(ks[8], (Cout, Cmid), jnp.float32)
    b2b = 0.1 * jax.random.normal(ks[9], (Cout,), jnp.float32)
    params = (wc, bc, w1g, b1g, w2g, b2g, w1b, b1b, w2b, b2b)

    x = jax.random.normal(ks[10], (B, Cin, D, H, W), jnp.float32)

    # spatial_tile=256 exercises the multi-tile stats accumulation path.
    out = upconv_forward(x, params, scale=2, spatial_tile=256)
    out = jax.block_until_ready(out)
    assert out.shape == (B, Cout, 2 * D, 2 * H, 2 * W), out.shape

    ref = jax.block_until_ready(upconv_reference(x, params, scale=2))
    assert np.allclose(np.asarray(out), np.asarray(ref), atol=2e-4, rtol=2e-4)

    print("KERNEL_OK")
</pallas_src>

<mosaic_0001>
module attributes {stable_mosaic.version = 11 : i64} {
  func.func @kernel(%arg0: i32, %arg1: i32, %arg2: memref<1x4x256xf32, #tpu.memory_space<vmem>>, %arg3: memref<8x4xf32, #tpu.memory_space<vmem>>, %arg4: memref<8x1xf32, #tpu.memory_space<vmem>>, %arg5: memref<1x8x2xf32, #tpu.memory_space<vmem>>, %arg6: memref<8x2xf32, #tpu.memory_space<vmem>>) attributes {dimension_semantics = [#tpu.dimension_semantics<parallel>, #tpu.dimension_semantics<arbitrary>], iteration_bounds = array<i64: 2, 2>, scalar_prefetch = 0 : i64, scratch_operands = 1 : i64, tpu.core_type = #tpu.core_type<tc>, window_params = [{transform_indices = @transform_0, window_bounds = array<i64: 1, 4, 256>}, {pipeline_mode = #tpu.pipeline_mode<synchronous>, transform_indices = @transform_1, window_bounds = array<i64: 8, 4>}, {pipeline_mode = #tpu.pipeline_mode<synchronous>, transform_indices = @transform_2, window_bounds = array<i64: 8, 1>}, {transform_indices = @transform_3, window_bounds = array<i64: 1, 8, 2>}]} {
    %c0_i32 = arith.constant 0 : i32
    %0 = arith.cmpi eq, %arg1, %c0_i32 : i32
    %1 = arith.extui %0 : i1 to i32
    %c0_i32_0 = arith.constant 0 : i32
    %2 = arith.cmpi ne, %1, %c0_i32_0 : i32
    scf.if %2 {
      %cst_17 = arith.constant 0.000000e+00 : f32
      %48 = vector.broadcast %cst_17 : f32 to vector<8x2xf32>
      %c0_18 = arith.constant 0 : index
      %c0_19 = arith.constant 0 : index
      %49 = vector.load %arg6[%c0_18, %c0_19] : memref<8x2xf32, #tpu.memory_space<vmem>>, vector<8x2xf32>
      tpu.vector_store %arg6[%c0_18, %c0_19], %48 {strides = array<i32>} : memref<8x2xf32, #tpu.memory_space<vmem>>, vector<8x2xf32>,
    } else {
    }
    %c0 = arith.constant 0 : index
    %c0_1 = arith.constant 0 : index
    %c0_2 = arith.constant 0 : index
    %3 = vector.load %arg2[%c0, %c0_1, %c0_2] : memref<1x4x256xf32, #tpu.memory_space<vmem>>, vector<1x4x256xf32>
    %4 = vector.shape_cast %3 : vector<1x4x256xf32> to vector<4x256xf32>
    %c0_3 = arith.constant 0 : index
    %c0_4 = arith.constant 0 : index
    %5 = vector.load %arg3[%c0_3, %c0_4] : memref<8x4xf32, #tpu.memory_space<vmem>>, vector<8x4xf32>
    %6 = vector.extract_strided_slice %5 {offsets = [0, 0], sizes = [8, 1], strides = [1, 1]} : vector<8x4xf32> to vector<8x1xf32>
    %7 = vector.extract_strided_slice %4 {offsets = [0, 0], sizes = [1, 256], strides = [1, 1]} : vector<4x256xf32> to vector<1x256xf32>
    %8 = vector.broadcast %6 : vector<8x1xf32> to vector<8x256xf32>
    %9 = vector.broadcast %7 : vector<1x256xf32> to vector<8x256xf32>
    %10 = arith.mulf %8, %9 : vector<8x256xf32>
    %11 = vector.extract_strided_slice %5 {offsets = [0, 1], sizes = [8, 1], strides = [1, 1]} : vector<8x4xf32> to vector<8x1xf32>
    %12 = vector.extract_strided_slice %4 {offsets = [1, 0], sizes = [1, 256], strides = [1, 1]} : vector<4x256xf32> to vector<1x256xf32>
    %13 = vector.broadcast %11 : vector<8x1xf32> to vector<8x256xf32>
    %14 = vector.broadcast %12 : vector<1x256xf32> to vector<8x256xf32>
    %15 = arith.mulf %13, %14 : vector<8x256xf32>
    %16 = arith.addf %10, %15 : vector<8x256xf32>
    %17 = vector.extract_strided_slice %5 {offsets = [0, 2], sizes = [8, 1], strides = [1, 1]} : vector<8x4xf32> to vector<8x1xf32>
    %18 = vector.extract_strided_slice %4 {offsets = [2, 0], sizes = [1, 256], strides = [1, 1]} : vector<4x256xf32> to vector<1x256xf32>
    %19 = vector.broadcast %17 : vector<8x1xf32> to vector<8x256xf32>
    %20 = vector.broadcast %18 : vector<1x256xf32> to vector<8x256xf32>
    %21 = arith.mulf %19, %20 : vector<8x256xf32>
    %22 = arith.addf %16, %21 : vector<8x256xf32>
    %23 = vector.extract_strided_slice %5 {offsets = [0, 3], sizes = [8, 1], strides = [1, 1]} : vector<8x4xf32> to vector<8x1xf32>
    %24 = vector.extract_strided_slice %4 {offsets = [3, 0], sizes = [1, 256], strides = [1, 1]} : vector<4x256xf32> to vector<1x256xf32>
    %25 = vector.broadcast %23 : vector<8x1xf32> to vector<8x256xf32>
    %26 = vector.broadcast %24 : vector<1x256xf32> to vector<8x256xf32>
    %27 = arith.mulf %25, %26 : vector<8x256xf32>
    %28 = arith.addf %22, %27 : vector<8x256xf32>
    %c0_5 = arith.constant 0 : index
    %c0_6 = arith.constant 0 : index
    %29 = vector.load %arg4[%c0_5, %c0_6] : memref<8x1xf32, #tpu.memory_space<vmem>>, vector<8x1xf32>
    %30 = vector.broadcast %29 : vector<8x1xf32> to vector<8x256xf32>
    %31 = arith.addf %28, %30 : vector<8x256xf32>
    %cst = arith.constant 0.000000e+00 : f32
    %32 = vector.broadcast %cst : f32 to vector<8x256xf32>
    %33 = arith.maximumf %31, %32 : vector<8x256xf32>
    %c0_7 = arith.constant 0 : index
    %c0_8 = arith.constant 0 : index
    %34 = vector.load %arg6[%c0_7, %c0_8] : memref<8x2xf32, #tpu.memory_space<vmem>>, vector<8x1xf32>
    %cst_9 = arith.constant dense<0.000000e+00> : vector<8xf32>
    %35 = vector.multi_reduction <add>, %33, %cst_9 [1] : vector<8x256xf32> to vector<8xf32>
    %36 = vector.shape_cast %35 : vector<8xf32> to vector<8x1xf32>
    %37 = arith.addf %34, %36 : vector<8x1xf32>
    %c0_10 = arith.constant 0 : index
    %c0_11 = arith.constant 0 : index
    %38 = vector.load %arg6[%c0_10, %c0_11] : memref<8x2xf32, #tpu.memory_space<vmem>>, vector<8x1xf32>
    tpu.vector_store %arg6[%c0_10, %c0_11], %37 {strides = array<i32>} : memref<8x2xf32, #tpu.memory_space<vmem>>, vector<8x1xf32>,
    %c0_12 = arith.constant 0 : index
    %c1 = arith.constant 1 : index
    %39 = vector.load %arg6[%c0_12, %c1] : memref<8x2xf32, #tpu.memory_space<vmem>>, vector<8x1xf32>
    %40 = arith.mulf %33, %33 : vector<8x256xf32>
    %cst_13 = arith.constant dense<0.000000e+00> : vector<8xf32>
    %41 = vector.multi_reduction <add>, %40, %cst_13 [1] : vector<8x256xf32> to vector<8xf32>
    %42 = vector.shape_cast %41 : vector<8xf32> to vector<8x1xf32>
    %43 = arith.addf %39, %42 : vector<8x1xf32>
    %c0_14 = arith.constant 0 : index
    %c1_15 = arith.constant 1 : index
    %44 = vector.load %arg6[%c0_14, %c1_15] : memref<8x2xf32, #tpu.memory_space<vmem>>, vector<8x1xf32>
    tpu.vector_store %arg6[%c0_14, %c1_15], %43 {strides = array<i32>} : memref<8x2xf32, #tpu.memory_space<vmem>>, vector<8x1xf32>,
    %c1_i32 = arith.constant 1 : i32
    %45 = arith.cmpi eq, %arg1, %c1_i32 : i32
    %46 = arith.extui %45 : i1 to i32
    %c0_i32_16 = arith.constant 0 : i32
    %47 = arith.cmpi ne, %46, %c0_i32_16 : i32
    scf.if %47 {
      %c0_17 = arith.constant 0 : index
      %c0_18 = arith.constant 0 : index
      %48 = vector.load %arg6[%c0_17, %c0_18] : memref<8x2xf32, #tpu.memory_space<vmem>>, vector<8x2xf32>
      %c0_19 = arith.constant 0 : index
      %c0_20 = arith.constant 0 : index
      %c0_21 = arith.constant 0 : index
      %49 = vector.load %arg5[%c0_19, %c0_20, %c0_21] : memref<1x8x2xf32, #tpu.memory_space<vmem>>, vector<1x8x2xf32>
      %50 = vector.shape_cast %49 : vector<1x8x2xf32> to vector<8x2xf32>
      %51 = vector.shape_cast %48 : vector<8x2xf32> to vector<1x8x2xf32>
      tpu.vector_store %arg5[%c0_19, %c0_20, %c0_21], %51 {strides = array<i32>} : memref<1x8x2xf32, #tpu.memory_space<vmem>>, vector<1x8x2xf32>,
    } else {
    }
    return
  }
  func.func @transform_0(%arg0: i32, %arg1: i32) -> (i32, i32, i32) {
    %c0_i32 = arith.constant 0 : i32
    %c0_i32_0 = arith.constant 0 : i32
    return %arg0, %c0_i32, %arg1 : i32, i32, i32
  }
  func.func @transform_1(%arg0: i32, %arg1: i32) -> (i32, i32) {
    %c0_i32 = arith.constant 0 : i32
    %c0_i32_0 = arith.constant 0 : i32
    %c0_i32_1 = arith.constant 0 : i32
    return %c0_i32, %c0_i32_0 : i32, i32
  }
  func.func @transform_2(%arg0: i32, %arg1: i32) -> (i32, i32) {
    %c0_i32 = arith.constant 0 : i32
    %c0_i32_0 = arith.constant 0 : i32
    %c0_i32_1 = arith.constant 0 : i32
    return %c0_i32, %c0_i32_0 : i32, i32
  }
  func.func @transform_3(%arg0: i32, %arg1: i32) -> (i32, i32, i32) {
    %c0_i32 = arith.constant 0 : i32
    %c0_i32_0 = arith.constant 0 : i32
    %c0_i32_1 = arith.constant 0 : i32
    return %arg0, %c0_i32, %c0_i32_0 : i32, i32, i32
  }
}

</mosaic_0001>

<llo_original>
// kernel: tpu_custom_call.1
$region0: #{tpu_custom_call.1}
  #allocation0 [shape = 'u32[]', space=smem, size = 0x4, offset = 0x4, fixed_abs, tag = 'smem constant byte address 0x4 - core index']
  #allocation1 [shape = 'u32[72,128]{1,0:T(1,128)}', space=vmem, size = 0x9000, scoped, tag = 'internal scratch']
  #allocation2 [shape = 'f32[8,2]{1,0:T(8,128)}', space=vmem, size = 0x1000, scoped, tag = 'scratch operand']
  %s0 = inlined_call_operand.hbm [shape: f32[2,4,512], index: 0, kind: input, shape index: {}]
  %s1 = inlined_call_operand.vmem [shape: f32[8,4], index: 1, kind: input, shape index: {}]
  %s2 = inlined_call_operand.vmem [shape: f32[8,1], index: 2, kind: input, shape index: {}]
  %s3 = inlined_call_operand.vmem [shape: f32[2,8,2], index: 3, kind: output, shape index: {}]
  %s4 = sld [smem:[#allocation0]]
  $region57: #{tpu_custom_call.1} parent=0
    _
  %s6 = ssub.s32 1, %s4
  %s7 = scalar_select 0, %s6, %s4
  $region1: #{tpu_custom_call.1} parent=0
    #allocation3 [shape = 'u8[8192]{0}', space=vmem, size = 0x2000, scoped, tag = 'input window, operand 0']
    #allocation4 [shape = 's32[2]{0}', space=sflag, size = 0x8, scoped, tag = 'scoped memory for tpu_custom_call.1']
    %8 = vsyncpa [#allocation4], 0
    %s9 = scalar_lea.sflag [#allocation4], 1
    %10 = vsyncpa %s9, 0
    loop: start=0, step=1, limit=6
    $region2: #{tpu_custom_call.1} parent=1 // loop_pre_header
      _
    $region3: #{tpu_custom_call.1} parent=1 // loop_header
      %s12 = sphi 0, %s16
      %p13 = scmp.ge.s32.totalorder %s12, 6
      %s19 = sphi 0, %s31
      %s20 = sphi 0, %s27
      %s21 = sphi 0, %s19
      %s22 = sphi 0, %s20
      %s23 = sphi 0, %s21
      %s24 = sphi 0, %s22
      %s36 = sphi 0, %s38
      %s39 = sphi 0, %s36
      %s40 = sphi 0, %s39
      %s56 = sphi 0, %s40
      %s60 = sphi 0, %s60
      %s62 = sphi 0, %s60
      %s63 = sphi 0, %s62
      %s77 = sphi 0, %s63
      %s81 = sphi 0, %s81
      %s83 = sphi 0, %s81
      %s84 = sphi 0, %s83
      %s98 = sphi 0, %s84
      %s104 = sphi 0, %s106
      %s107 = sphi 0, %s104
      %s108 = sphi 0, %s107
      %s124 = sphi 0, %s108
    $region4: #{tpu_custom_call.1} parent=1 // loop_header_branch
      %15 = sbr.rel (%p13) target = $region8
    $region5: #{tpu_custom_call.1} parent=1 // loop_body
      %s17 = ssub.s32 %s12, 1
      %s18 = ssub.s32 %s12, 2
      %s25 = sadd.s32 1, %s20
      %p26 = scmp.ge.s32.totalorder %s25, 2
      %s27 = scalar_select %p26, 0, %s25
      %s28 = sadd.s32 1, %s19
      %s29 = scalar_select %p26, %s28, %s19
      %p30 = scmp.ge.s32.totalorder %s29, 2
      %s31 = scalar_select %p30, 0, %s29
      %s32 = ssub.s32 %s19, %s31
      %s33 = ssub.s32 %s20, %s27
      %s34 = sor.u32 %s32, %s33
      %p35 = scmp.eq.s32.totalorder %s34, 0
      %s37 = sadd.s32 %s36, 1
      %s38 = scalar_select %p35, %s36, %s37
      %p41 = pneg %p35
      %p42 = scmp.eq.s32.totalorder %s12, 3
      %p43 = por %p41, %p42
      %p44 = scmp.ne.s32.totalorder %s36, %s39
      %p45 = scmp.eq.s32.totalorder %s12, 0
      %p46 = por %p44, %p45
      %p47 = scmp.ne.s32.totalorder %s36, %s39
      %p48 = scmp.eq.s32.totalorder %s17, 3
      %p49 = por %p47, %p48
      %p50 = scmp.ne.s32.totalorder %s39, %s40
      %p51 = scmp.eq.s32.totalorder %s17, 0
      %p52 = por %p50, %p51
      %p53 = scmp.ne.s32.totalorder %s39, %s40
      %p54 = scmp.eq.s32.totalorder %s18, 3
      %p55 = por %p53, %p54
      %p57 = scmp.ne.s32.totalorder %s40, %s56
      %p58 = scmp.eq.s32.totalorder %s18, 0
      %p59 = por %p57, %p58
      %s61 = sadd.s32 %s60, 1
      %p64 = scmp.eq.s32.totalorder %s12, 3
      %p65 = scmp.ne.s32.totalorder %s60, %s62
      %p66 = scmp.eq.s32.totalorder %s12, 0
      %p67 = por %p65, %p66
      %p68 = scmp.ne.s32.totalorder %s60, %s62
      %p69 = scmp.eq.s32.totalorder %s17, 3
      %p70 = por %p68, %p69
      %p71 = scmp.ne.s32.totalorder %s62, %s63
      %p72 = scmp.eq.s32.totalorder %s17, 0
      %p73 = por %p71, %p72
      %p74 = scmp.ne.s32.totalorder %s62, %s63
      %p75 = scmp.eq.s32.totalorder %s18, 3
      %p76 = por %p74, %p75
      %p78 = scmp.ne.s32.totalorder %s63, %s77
      %p79 = scmp.eq.s32.totalorder %s18, 0
      %p80 = por %p78, %p79
      %s82 = sadd.s32 %s81, 1
      %p85 = scmp.eq.s32.totalorder %s12, 3
      %p86 = scmp.ne.s32.totalorder %s81, %s83
      %p87 = scmp.eq.s32.totalorder %s12, 0
      %p88 = por %p86, %p87
      %p89 = scmp.ne.s32.totalorder %s81, %s83
      %p90 = scmp.eq.s32.totalorder %s17, 3
      %p91 = por %p89, %p90
      %p92 = scmp.ne.s32.totalorder %s83, %s84
      %p93 = scmp.eq.s32.totalorder %s17, 0
      %p94 = por %p92, %p93
      %p95 = scmp.ne.s32.totalorder %s83, %s84
      %p96 = scmp.eq.s32.totalorder %s18, 3
      %p97 = por %p95, %p96
      %p99 = scmp.ne.s32.totalorder %s84, %s98
      %p100 = scmp.eq.s32.totalorder %s18, 0
      %p101 = por %p99, %p100
      %s102 = ssub.s32 %s19, %s31
      %p103 = scmp.eq.s32.totalorder %s102, 0
      %s105 = sadd.s32 %s104, 1
      %s106 = scalar_select %p103, %s104, %s105
      %p109 = pneg %p103
      %p110 = scmp.eq.s32.totalorder %s12, 3
      %p111 = por %p109, %p110
      %p112 = scmp.ne.s32.totalorder %s104, %s107
      %p113 = scmp.eq.s32.totalorder %s12, 0
      %p114 = por %p112, %p113
      %p115 = scmp.ne.s32.totalorder %s104, %s107
      %p116 = scmp.eq.s32.totalorder %s17, 3
      %p117 = por %p115, %p116
      %p118 = scmp.ne.s32.totalorder %s107, %s108
      %p119 = scmp.eq.s32.totalorder %s17, 0
      %p120 = por %p118, %p119
      %p121 = scmp.ne.s32.totalorder %s107, %s108
      %p122 = scmp.eq.s32.totalorder %s18, 3
      %p123 = por %p121, %p122
      %p125 = scmp.ne.s32.totalorder %s108, %s124
      %p126 = scmp.eq.s32.totalorder %s18, 0
      %p127 = por %p125, %p126
      %p128 = scmp.le.s32.totalorder 1, %s12
      %p129 = scmp.lt.s32.totalorder %s12, 5
      %p130 = pnand %p128, %p129
      %p131 = pneg %p130
      // Predicated region
      $region9: #{tpu_custom_call.1} parent=5 // pred_check
        _
      $region10: #{tpu_custom_call.1} parent=5 // pred_check_branch
        %133 = sbr.rel (%p130) target = $region12
      $region11: #{tpu_custom_call.1} parent=5 // pred_region
        %s134 = ssub.s32 %s12, 1
        // Predicated region
        $region13: #{tpu_custom_call.1} parent=11 // pred_check
          %p135 = pneg %p73
        $region14: #{tpu_custom_call.1} parent=11 // pred_check_branch
          %137 = sbr.rel (%p135) target = $region16
        $region15: #{tpu_custom_call.1} parent=11 // pred_region
          _
        $region16: #{tpu_custom_call.1} parent=11 // pred_fallthru
          _
        // Predicated region
        $region17: #{tpu_custom_call.1} parent=11 // pred_check
          %p138 = pneg %p94
        $region18: #{tpu_custom_call.1} parent=11 // pred_check_branch
          %140 = sbr.rel (%p138) target = $region20
        $region19: #{tpu_custom_call.1} parent=11 // pred_region
          _
        $region20: #{tpu_custom_call.1} parent=11 // pred_fallthru
          _
      $region12: #{tpu_custom_call.1} parent=5 // pred_fallthru
        _
      %p141 = scmp.lt.s32.totalorder %s12, 4
      // Predicated region
      $region21: #{tpu_custom_call.1} parent=5 // pred_check
        %p142 = pneg %p141
      $region22: #{tpu_custom_call.1} parent=5 // pred_check_branch
        %144 = sbr.rel (%p142) target = $region24
      $region23: #{tpu_custom_call.1} parent=5 // pred_region
        // Predicated region
        $region25: #{tpu_custom_call.1} parent=23 // pred_check
          %p145 = pneg %p46
        $region26: #{tpu_custom_call.1} parent=23 // pred_check_branch
          %147 = sbr.rel (%p145) target = $region28
        $region27: #{tpu_custom_call.1} parent=23 // pred_region
          %s148 = sand.u32 %s36, 1
          %s149 = scalar_lea.sflag [#allocation4], %s148
          %s150 = sand.u32 %s36, 1
          %s151 = smul.addr %s150, 8
          %s152 = scalar_lea.vmem [#allocation3], %s151
          %s153 = smul.u32 2, %s20
          %155 = vsyncadd %s149, 0
          %s156 = smul.addr %s19, 4
          %s157 = sadd.s32 %s153, %s156
          %s158 = smul.addr %s157, 4
          %s159 = scalar_lea.hbm %s0, %s158
          %s161 = sshll.u32 %s159, 4
          %s162 = int_to_ptr.hbm [resolvable:$true] %s161
          %s163 = sshll.u32 %s152, 4
          %s164 = int_to_ptr.vmem [resolvable:$true] %s163
          %166 = dma.hbm_to_vmem [thread:$0]  %s162, 128, %s164, %s149
        $region28: #{tpu_custom_call.1} parent=23 // pred_fallthru
          _
      $region24: #{tpu_custom_call.1} parent=5 // pred_fallthru
        _
      %p167 = scmp.le.s32.totalorder 1, %s12
      %p168 = scmp.lt.s32.totalorder %s12, 5
      %p169 = pnand %p167, %p168
      %p170 = pneg %p169
      // Predicated region
      $region29: #{tpu_custom_call.1} parent=5 // pred_check
        _
      $region30: #{tpu_custom_call.1} parent=5 // pred_check_branch
        %172 = sbr.rel (%p169) target = $region32
      $region31: #{tpu_custom_call.1} parent=5 // pred_region
        %s173 = ssub.s32 %s12, 1
        %s174 = sand.u32 %s39, 1
        %s175 = scalar_lea.sflag [#allocation4], %s174
        %s176 = sand.u32 %s39, 1
        %s177 = smul.addr %s176, 8
        %s178 = scalar_lea.vmem [#allocation3], %s177
        // Predicated region
        $region33: #{tpu_custom_call.1} parent=31 // pred_check
          %p179 = pneg %p52
        $region34: #{tpu_custom_call.1} parent=31 // pred_check_branch
          %181 = sbr.rel (%p179) target = $region36
        $region35: #{tpu_custom_call.1} parent=31 // pred_region
          %183 = dma.done %s175, 128
        $region36: #{tpu_custom_call.1} parent=31 // pred_fallthru
          _
        %s184 = sand.u32 %s39, 1
        %s185 = scalar_lea.sflag [#allocation4], %s184
        %s186 = sand.u32 %s39, 1
        %s187 = smul.addr %s186, 8
        %s188 = scalar_lea.vmem [#allocation3], %s187
        %p189 = pneg %p52
        %p190 = pneg %p49
        %p191 = pneg %p73
        %p192 = pneg %p70
        %p193 = pneg %p94
        %p194 = pneg %p91
        %p195 = pneg %p120
        %p196 = pneg %p117
        %p197 = scmp.lt.s32.totalorder %s21, 1
        %s198 = scalar_select %p197, %s21, 1
        %s199 = smul.addr %s198, 8
        %s200 = scalar_lea.vmem %s3, %s199
        %s201 = smul.u32 2, %s22
        %p202 = scmp.lt.s32.totalorder %s21, 1
        %s203 = scalar_select %p202, %s21, 1
        %s204 = smul.addr %s203, 8
        %s205 = scalar_lea.vmem %s3, %s204
        %p206 = scmp.eq.s32.totalorder %s22, 0
        // Predicated region
        $region37: #{tpu_custom_call.1} parent=31 // pred_check
          %p207 = pneg %p206
        $region38: #{tpu_custom_call.1} parent=31 // pred_check_branch
          %209 = sbr.rel (%p207) target = $region40
        $region39: #{tpu_custom_call.1} parent=31 // pred_region
          %vm210 = vcmask 15360
          %211 = vst.msk [vmem:[#allocation2] sm:$0xff] %vm210, 0.0
        $region40: #{tpu_custom_call.1} parent=31 // pred_fallthru
          _
        %v212 = vld [vmem:[%s178] sm:$0xff]
        %v213 = vld [vmem:[%s1] sm:$0xff]
        %215 = vset.pattern.permute.xlu0 0
        %216 = vperm.xlu0 %215, %v213
        %v217 = vpop.permute.xlu0 %216
        %v220 = vperm.slane %v212, 0
        %v221 = vperm.slane %v212, 4
        %v224 = vperm.slane %v220, 0
        %v225 = vperm.slane %v221, 0
        %v226 = vmul.f32 %v217, %v224
        %v227 = vmul.f32 %v217, %v225
        %228 = vset.pattern.permute.xlu0 1
        %229 = vperm.xlu0 %228, %v213
        %v230 = vpop.permute.xlu0 %229
        %v232 = vperm.slane %v212, 1
        %v233 = vperm.slane %v212, 5
        %v236 = vperm.slane %v232, 1
        %v237 = vperm.slane %v233, 1
        %v238 = vmul.f32 %v230, %v236
        %v239 = vmul.f32 %v230, %v237
        %v240 = vadd.f32 %v226, %v238
        %v241 = vadd.f32 %v227, %v239
        %242 = vset.pattern.permute.xlu0 2
        %243 = vperm.xlu0 %242, %v213
        %v244 = vpop.permute.xlu0 %243
        %v246 = vperm.slane %v212, 2
        %v247 = vperm.slane %v212, 6
        %v250 = vperm.slane %v246, 2
        %v251 = vperm.slane %v247, 2
        %v252 = vmul.f32 %v244, %v250
        %v253 = vmul.f32 %v244, %v251
        %v254 = vadd.f32 %v240, %v252
        %v255 = vadd.f32 %v241, %v253
        %256 = vset.pattern.permute.xlu0 3
        %257 = vperm.xlu0 %256, %v213
        %v258 = vpop.permute.xlu0 %257
        %v260 = vperm.slane %v212, 3
        %v261 = vperm.slane %v212, 7
        %v264 = vperm.slane %v260, 3
        %v265 = vperm.slane %v261, 3
        %v266 = vmul.f32 %v258, %v264
        %v267 = vmul.f32 %v258, %v265
        %v268 = vadd.f32 %v254, %v266
        %v269 = vadd.f32 %v255, %v267
        %v270 = vld [vmem:[%s2] sm:$0xff]
        %272 = vset.pattern.permute.xlu0 0
        %273 = vperm.xlu0 %272, %v270
        %v274 = vpop.permute.xlu0 %273
        %v276 = vadd.f32 %v268, %v274
        %v277 = vadd.f32 %v269, %v274
        %v278 = vmax.f32 %v276, 0.0
        %v279 = vmax.f32 %v277, 0.0
        %v280 = vld [vmem:[#allocation2] sm:$0xff]
        %v281 = vadd.f32 %v278, %v279
        %282 = vadd.xlane.f32.xlu0 %v281
        %v283 = vpop.xlane.xlu0 %282
        %v284 = vadd.f32 %v280, %v283
        %vm285 = vcmask 7168
        %286 = vst.msk [vmem:[#allocation2] sm:$0xff] %vm285, %v284
        %v287 = vld [vmem:[#allocation2] sm:$0xff]
        %v288 = vmul.f32 %v278, %v278
        %v289 = vmul.f32 %v279, %v279
        %v290 = vadd.f32 %v288, %v289
        %291 = vadd.xlane.f32.xlu0 %v290
        %v292 = vpop.xlane.xlu0 %291
        %v293 = vadd.f32 %v287, %v292
        %vm294 = vcmask 15368
        %295 = vst.msk [vmem:[#allocation2] sm:$0xff] %vm294, %v293
        %p296 = scmp.eq.s32.totalorder %s22, 1
        // Predicated region
        $region41: #{tpu_custom_call.1} parent=31 // pred_check
          %p297 = pneg %p296
        $region42: #{tpu_custom_call.1} parent=31 // pred_check_branch
          %299 = sbr.rel (%p297) target = $region44
        $region43: #{tpu_custom_call.1} parent=31 // pred_region
          %v300 = vld [vmem:[#allocation2] sm:$0xff]
          %vm301 = vcmask 15360
          %302 = vst.msk [vmem:[%s205] sm:$0xff] %vm301, %v300
        $region44: #{tpu_custom_call.1} parent=31 // pred_fallthru
          _
        %p303 = scmp.lt.s32.totalorder %s21, 1
        %s304 = scalar_select %p303, %s21, 1
        %s305 = smul.addr %s304, 8
        %s306 = scalar_lea.vmem %s3, %s305
        // Predicated region
        $region45: #{tpu_custom_call.1} parent=31 // pred_check
          %p307 = pneg %p117
        $region46: #{tpu_custom_call.1} parent=31 // pred_check_branch
          %309 = sbr.rel (%p307) target = $region48
        $region47: #{tpu_custom_call.1} parent=31 // pred_region
          _
        $region48: #{tpu_custom_call.1} parent=31 // pred_fallthru
          _
      $region32: #{tpu_custom_call.1} parent=5 // pred_fallthru
        _
      %p310 = scmp.le.s32.totalorder 2, %s12
      // Predicated region
      $region49: #{tpu_custom_call.1} parent=5 // pred_check
        %p311 = pneg %p310
      $region50: #{tpu_custom_call.1} parent=5 // pred_check_branch
        %313 = sbr.rel (%p311) target = $region52
      $region51: #{tpu_custom_call.1} parent=5 // pred_region
        %s314 = ssub.s32 %s12, 2
        // Predicated region
        $region53: #{tpu_custom_call.1} parent=51 // pred_check
          %p315 = pneg %p123
        $region54: #{tpu_custom_call.1} parent=51 // pred_check_branch
          %317 = sbr.rel (%p315) target = $region56
        $region55: #{tpu_custom_call.1} parent=51 // pred_region
          %p318 = scmp.lt.s32.totalorder %s23, 1
          %s319 = scalar_select %p318, %s23, 1
          %s320 = smul.addr %s319, 8
          %s321 = scalar_lea.vmem %s3, %s320
        $region56: #{tpu_custom_call.1} parent=51 // pred_fallthru
          _
      $region52: #{tpu_custom_call.1} parent=5 // pred_fallthru
        _
    $region6: #{tpu_custom_call.1} parent=1 // loop_footer
      %s16 = sadd.s32 1, %s12
    $region7: #{tpu_custom_call.1} parent=1 // loop_footer_branch
      %11 = sbr.rel target = $region3
    $region8: #{tpu_custom_call.1} parent=1 // loop_exit
      _
    %322 = vsyncpa [#allocation4], 1
    %s323 = scalar_lea.sflag [#allocation4], 1
    %324 = vsyncpa %s323, 1

</llo_original>
